<compile_context>
chip_gen: v7x
topology: tpu7x:2x2x1
jax: 0.10.0
libtpu: 0.0.40
codegen_flags: <defaults>
</compile_context>

<pallas_src>
import numpy as np
import jax
import jax.numpy as jnp
from jax import lax
from jax.experimental import pallas as pl
from jax.experimental.pallas import tpu as pltpu


def _round_up(x, m):
    return ((x + m - 1) // m) * m


# ----------------------------------------------------------------------------
# Anchor utilities (pure numpy, identical semantics to the reference module)
# ----------------------------------------------------------------------------
def generate_anchor_base(base_size=16, ratios=(0.5, 1, 2), anchor_scales=(8, 16, 32)):
    py = base_size / 2.0
    px = base_size / 2.0
    anchor_base = np.zeros((len(ratios) * len(anchor_scales), 4), dtype=np.float32)
    for i in range(len(ratios)):
        for j in range(len(anchor_scales)):
            h = base_size * anchor_scales[j] * np.sqrt(ratios[i])
            w = base_size * anchor_scales[j] * np.sqrt(1.0 / ratios[i])
            index = i * len(anchor_scales) + j
            anchor_base[index, 0] = py - h / 2.0
            anchor_base[index, 1] = px - w / 2.0
            anchor_base[index, 2] = py + h / 2.0
            anchor_base[index, 3] = px + w / 2.0
    return anchor_base


def _enumerate_shifted_anchor(anchor_base, feat_stride, height, width):
    shift_y = np.arange(0, height * feat_stride, feat_stride)
    shift_x = np.arange(0, width * feat_stride, feat_stride)
    shift_x, shift_y = np.meshgrid(shift_x, shift_y)
    shift = np.stack(
        (shift_y.ravel(), shift_x.ravel(), shift_y.ravel(), shift_x.ravel()), axis=1
    )
    A = anchor_base.shape[0]
    K = shift.shape[0]
    anchor = anchor_base.reshape((1, A, 4)) + shift.reshape((1, K, 4)).transpose((1, 0, 2))
    anchor = anchor.reshape((K * A, 4)).astype(np.float32)
    return anchor


# ----------------------------------------------------------------------------
# Pallas kernel: two fused MXU matmuls + ReLU + selective sigmoid, one wide store
# ----------------------------------------------------------------------------
def _make_rpn_kernel(fg_start, fg_end):
    def rpn_kernel(
        p_ref,    # (1, TILE_M, K_pad)   bf16 im2col patches (row tile of one image)
        w1_ref,   # (K_pad, C_mid)       bf16 fused 3x3 conv weight
        b1_ref,   # (1, C_mid)           f32
        w2_ref,   # (C_mid, OUT_PAD)     bf16 fused [loc | score | fg-logit] weight
        b2_ref,   # (1, OUT_PAD)         f32
        out_ref,  # (1, TILE_M, OUT_PAD) f32 output slab
    ):
        # conv3x3 (as one matmul over K = 9*C_in) + bias + ReLU
        h = jnp.dot(p_ref[0], w1_ref[...], preferred_element_type=jnp.float32)
        h = jnp.maximum(h + b1_ref[...], 0.0).astype(w2_ref.dtype)

        # fused 1x1 convs: [loc(4A) | score(2A, interleaved) | fg-logit(A) | pad]
        out = jnp.dot(h, w2_ref[...], preferred_element_type=jnp.float32) + b2_ref[...]

        # softmax over the 2 classes: softmax([s0,s1])[1] == sigmoid(s1-s0),
        # applied only to the fg-logit columns via a lane mask (no partial store).
        col = lax.broadcasted_iota(jnp.int32, out.shape, 1)
        fg = jax.nn.sigmoid(out)
        out_ref[0] = jnp.where((col >= fg_start) & (col < fg_end), fg, out)

    return rpn_kernel


def rpn_head_pallas(x_nchw, w1_oihw, b1, wloc_oi, bloc, wscore_oi, bscore):
    """conv1+ReLU, loc conv, score conv and per-anchor softmax, fused in Pallas.

    x_nchw:    (N, C_in, H, W) float32
    w1_oihw:   (C_mid, C_in, 3, 3)
    wloc_oi:   (A*4, C_mid)   (1x1 conv weight, squeezed)
    wscore_oi: (A*2, C_mid)
    """
    N, C_in, H, W = x_nchw.shape
    C_mid = w1_oihw.shape[0]
    A = wscore_oi.shape[0] // 2
    HW = H * W

    K9 = 9 * C_in
    K_pad = _round_up(K9, 128)
    OUT_COLS = A * 4 + A * 2 + A          # locs | scores (interleaved) | fg
    OUT_PAD = _round_up(OUT_COLS, 128)

    if HW <= 512:
        TILE_M = _round_up(HW, 8)
    else:
        TILE_M = 256
    HW_pad = _round_up(HW, TILE_M)

    # --- glue: im2col in the wrapper (NCHW -> padded NHWC -> (N, HW_pad, K_pad))
    x_nhwc = jnp.transpose(x_nchw, (0, 2, 3, 1))
    x_sp = jnp.pad(x_nhwc, ((0, 0), (1, 1), (1, 1), (0, 0)))
    taps = [x_sp[:, ky:ky + H, kx:kx + W, :] for ky in range(3) for kx in range(3)]
    patches = jnp.concatenate(taps, axis=-1).reshape(N, HW, K9)
    patches = jnp.pad(patches, ((0, 0), (0, HW_pad - HW), (0, K_pad - K9)))
    patches = patches.astype(jnp.bfloat16)

    # --- conv1 weight: OIHW -> (9*C_in, C_mid), rows in (ky, kx, c) order (matches taps)
    w1 = jnp.transpose(w1_oihw, (2, 3, 1, 0)).reshape(K9, C_mid)
    w1 = jnp.pad(w1, ((0, K_pad - K9), (0, 0))).astype(jnp.bfloat16)
    b1_2d = b1.reshape(1, C_mid).astype(jnp.float32)

    # --- fused 1x1 weights: [loc | score (original interleaved order) | (s1 - s0)]
    wloc = jnp.transpose(wloc_oi, (1, 0))              # (C_mid, 4A)
    wsc = jnp.transpose(wscore_oi, (1, 0))             # (C_mid, 2A)
    wfg = wsc[:, 1::2] - wsc[:, 0::2]                  # (C_mid, A) fg logit weight
    w2 = jnp.concatenate([wloc, wsc, wfg], axis=-1)    # (C_mid, 7A)
    w2 = jnp.pad(w2, ((0, 0), (0, OUT_PAD - OUT_COLS))).astype(jnp.bfloat16)
    b2 = jnp.concatenate([bloc, bscore, bscore[1::2] - bscore[0::2]])
    b2 = jnp.pad(b2, (0, OUT_PAD - OUT_COLS)).reshape(1, OUT_PAD).astype(jnp.float32)

    kernel = _make_rpn_kernel(A * 6, A * 7)
    grid = (N, HW_pad // TILE_M)

    grid_spec = pltpu.PrefetchScalarGridSpec(
        num_scalar_prefetch=0,
        grid=grid,
        in_specs=[
            pl.BlockSpec((1, TILE_M, K_pad), lambda n, m: (n, m, 0)),
            pl.BlockSpec((K_pad, C_mid), lambda n, m: (0, 0)),
            pl.BlockSpec((1, C_mid), lambda n, m: (0, 0)),
            pl.BlockSpec((C_mid, OUT_PAD), lambda n, m: (0, 0)),
            pl.BlockSpec((1, OUT_PAD), lambda n, m: (0, 0)),
        ],
        out_specs=pl.BlockSpec((1, TILE_M, OUT_PAD), lambda n, m: (n, m, 0)),
    )

    out = pl.pallas_call(
        kernel,
        out_shape=jax.ShapeDtypeStruct((N, HW_pad, OUT_PAD), jnp.float32),
        grid_spec=grid_spec,
        compiler_params=pltpu.CompilerParams(
            dimension_semantics=("parallel", "parallel")),
    )(patches, w1, b1_2d, w2, b2)

    # --- glue: slice the lane-dense slab into the PyTorch return layouts
    out = out[:, :HW, :]
    rpn_locs = out[:, :, :A * 4].reshape(N, HW * A, 4)            # (N, H*W*A, 4)
    rpn_scores = out[:, :, A * 4:A * 6].reshape(N, HW * A, 2)     # (N, H*W*A, 2)
    rpn_fg_scores = out[:, :, A * 6:A * 7].reshape(N, HW * A)     # (N, H*W*A)
    return rpn_locs, rpn_scores, rpn_fg_scores


# ----------------------------------------------------------------------------
# RegionProposalNetwork forward (Pallas-backed)
# ----------------------------------------------------------------------------
class RegionProposalNetworkPallas:
    def __init__(self, in_channels=16, mid_channels=32,
                 ratios=(0.5, 1, 2), anchor_scales=(8, 16, 32), feat_stride=16,
                 seed=0):
        self.anchor_base = generate_anchor_base(
            anchor_scales=anchor_scales, ratios=ratios)
        self.feat_stride = feat_stride
        n_anchor = self.anchor_base.shape[0]
        self.n_anchor = n_anchor

        # normal_init(m, 0, 0.01): weights ~ N(0, 0.01), biases = 0
        k = jax.random.split(jax.random.PRNGKey(seed), 3)
        self.conv1_w = 0.01 * jax.random.normal(
            k[0], (mid_channels, in_channels, 3, 3), jnp.float32)
        self.conv1_b = jnp.zeros((mid_channels,), jnp.float32)
        self.score_w = 0.01 * jax.random.normal(
            k[1], (n_anchor * 2, mid_channels), jnp.float32)
        self.score_b = jnp.zeros((n_anchor * 2,), jnp.float32)
        self.loc_w = 0.01 * jax.random.normal(
            k[2], (n_anchor * 4, mid_channels), jnp.float32)
        self.loc_b = jnp.zeros((n_anchor * 4,), jnp.float32)

    def forward(self, x, img_size, scale=1.0):
        n, _, hh, ww = x.shape
        anchor = _enumerate_shifted_anchor(
            np.array(self.anchor_base), self.feat_stride, hh, ww)

        rpn_locs, rpn_scores, rpn_fg_scores = rpn_head_pallas(
            x, self.conv1_w, self.conv1_b,
            self.loc_w, self.loc_b, self.score_w, self.score_b)

        # TODO(synk): ProposalCreator (decode + clip + sort + NMS, data-dependent
        # output size) has no clean Pallas equivalent and its source was not
        # provided; returning empty rois / roi_indices.
        rois = np.zeros((0, 4), dtype=np.float32)
        roi_indices = np.zeros((0,), dtype=np.int32)
        return rpn_locs, rpn_scores, rois, roi_indices, anchor, rpn_fg_scores


# ----------------------------------------------------------------------------
# Pure-JAX f32 reference for numerical verification
# ----------------------------------------------------------------------------
def _reference(x, rpn):
    n, _, hh, ww = x.shape
    A = rpn.n_anchor
    dn = ("NCHW", "OIHW", "NCHW")
    h = lax.conv_general_dilated(x, rpn.conv1_w, (1, 1), [(1, 1), (1, 1)],
                                 dimension_numbers=dn)
    h = jax.nn.relu(h + rpn.conv1_b[None, :, None, None])
    locs = lax.conv_general_dilated(h, rpn.loc_w[:, :, None, None], (1, 1),
                                    [(0, 0), (0, 0)], dimension_numbers=dn)
    locs = locs + rpn.loc_b[None, :, None, None]
    scores = lax.conv_general_dilated(h, rpn.score_w[:, :, None, None], (1, 1),
                                      [(0, 0), (0, 0)], dimension_numbers=dn)
    scores = scores + rpn.score_b[None, :, None, None]
    rpn_locs = jnp.transpose(locs, (0, 2, 3, 1)).reshape(n, -1, 4)
    rpn_scores_nhwc = jnp.transpose(scores, (0, 2, 3, 1))
    soft = jax.nn.softmax(rpn_scores_nhwc.reshape(n, hh, ww, A, 2), axis=4)
    rpn_fg = soft[..., 1].reshape(n, -1)
    rpn_scores = rpn_scores_nhwc.reshape(n, -1, 2)
    return rpn_locs, rpn_scores, rpn_fg


if __name__ == "__main__":
    # Small shapes: N=2, C_in=16, C_mid=32, H=W=8, 9 anchors per location.
    N, C_in, C_mid, H, W = 2, 16, 32, 8, 8
    key = jax.random.PRNGKey(0)
    x = jax.random.normal(key, (N, C_in, H, W), jnp.float32)

    rpn = RegionProposalNetworkPallas(in_channels=C_in, mid_channels=C_mid, seed=0)
    img_size = (H * rpn.feat_stride, W * rpn.feat_stride)

    rpn_locs, rpn_scores, rois, roi_indices, anchor, rpn_fg = rpn.forward(
        x, img_size, scale=1.0)
    jax.block_until_ready((rpn_locs, rpn_scores, rpn_fg))

    # sanity check against pure-JAX f32 reference
    # (tolerances loosened vs the f32-only version because inputs/weights are
    #  cast to bf16 in the kernel; accumulation stays f32).
    ref_locs, ref_scores, ref_fg = _reference(x, rpn)
    np.testing.assert_allclose(np.asarray(rpn_locs), np.asarray(ref_locs),
                               rtol=5e-2, atol=1e-3)
    np.testing.assert_allclose(np.asarray(rpn_scores), np.asarray(ref_scores),
                               rtol=5e-2, atol=1e-3)
    np.testing.assert_allclose(np.asarray(rpn_fg), np.asarray(ref_fg),
                               rtol=5e-2, atol=1e-3)
    assert rpn_locs.shape == (N, H * W * rpn.n_anchor, 4)
    assert rpn_scores.shape == (N, H * W * rpn.n_anchor, 2)
    assert rpn_fg.shape == (N, H * W * rpn.n_anchor)
    assert anchor.shape == (H * W * rpn.n_anchor, 4)

    print("KERNEL_OK")
</pallas_src>

<mosaic_0001>
module attributes {stable_mosaic.version = 11 : i64} {
  func.func @rpn_kernel(%arg0: i32, %arg1: i32, %arg2: memref<1x64x256xbf16, #tpu.memory_space<vmem>>, %arg3: memref<256x32xbf16, #tpu.memory_space<vmem>>, %arg4: memref<1x32xf32, #tpu.memory_space<vmem>>, %arg5: memref<32x128xbf16, #tpu.memory_space<vmem>>, %arg6: memref<1x128xf32, #tpu.memory_space<vmem>>, %arg7: memref<1x64x128xf32, #tpu.memory_space<vmem>>) attributes {dimension_semantics = [#tpu.dimension_semantics<parallel>, #tpu.dimension_semantics<parallel>], iteration_bounds = array<i64: 2, 1>, scalar_prefetch = 0 : i64, scratch_operands = 0 : i64, tpu.core_type = #tpu.core_type<tc>, window_params = [{transform_indices = @transform_0, window_bounds = array<i64: 1, 64, 256>}, {pipeline_mode = #tpu.pipeline_mode<synchronous>, transform_indices = @transform_1, window_bounds = array<i64: 256, 32>}, {pipeline_mode = #tpu.pipeline_mode<synchronous>, transform_indices = @transform_2, window_bounds = array<i64: 1, 32>}, {pipeline_mode = #tpu.pipeline_mode<synchronous>, transform_indices = @transform_3, window_bounds = array<i64: 32, 128>}, {pipeline_mode = #tpu.pipeline_mode<synchronous>, transform_indices = @transform_4, window_bounds = array<i64: 1, 128>}, {transform_indices = @transform_5, window_bounds = array<i64: 1, 64, 128>}]} {
    %c0 = arith.constant 0 : index
    %c0_0 = arith.constant 0 : index
    %c0_1 = arith.constant 0 : index
    %0 = vector.load %arg2[%c0, %c0_0, %c0_1] : memref<1x64x256xbf16, #tpu.memory_space<vmem>>, vector<1x64x256xbf16>
    %1 = vector.shape_cast %0 : vector<1x64x256xbf16> to vector<64x256xbf16>
    %c0_2 = arith.constant 0 : index
    %c0_3 = arith.constant 0 : index
    %2 = vector.load %arg3[%c0_2, %c0_3] : memref<256x32xbf16, #tpu.memory_space<vmem>>, vector<256x32xbf16>
    %cst = arith.constant dense<0.000000e+00> : vector<64x32xf32>
    %3 = tpu.matmul %1, %2, %cst {dimension_numbers = #tpu.dot_dimension_numbers<[1], [0], [0], [1], [0, 0, 1, 1], [], []>} : vector<64x256xbf16>, vector<256x32xbf16>, vector<64x32xf32> -> vector<64x32xf32>
    %c0_4 = arith.constant 0 : index
    %c0_5 = arith.constant 0 : index
    %4 = vector.load %arg4[%c0_4, %c0_5] : memref<1x32xf32, #tpu.memory_space<vmem>>, vector<1x32xf32>
    %5 = vector.broadcast %4 : vector<1x32xf32> to vector<64x32xf32>
    %6 = arith.addf %3, %5 : vector<64x32xf32>
    %cst_6 = arith.constant 0.000000e+00 : f32
    %7 = vector.broadcast %cst_6 : f32 to vector<64x32xf32>
    %8 = arith.maximumf %6, %7 : vector<64x32xf32>
    %9 = arith.truncf %8 : vector<64x32xf32> to vector<64x32xbf16>
    %c0_7 = arith.constant 0 : index
    %c0_8 = arith.constant 0 : index
    %10 = vector.load %arg5[%c0_7, %c0_8] : memref<32x128xbf16, #tpu.memory_space<vmem>>, vector<32x128xbf16>
    %cst_9 = arith.constant dense<0.000000e+00> : vector<64x128xf32>
    %11 = tpu.matmul %9, %10, %cst_9 {dimension_numbers = #tpu.dot_dimension_numbers<[1], [0], [0], [1], [0, 0, 1, 1], [], []>} : vector<64x32xbf16>, vector<32x128xbf16>, vector<64x128xf32> -> vector<64x128xf32>
    %c0_10 = arith.constant 0 : index
    %c0_11 = arith.constant 0 : index
    %12 = vector.load %arg6[%c0_10, %c0_11] : memref<1x128xf32, #tpu.memory_space<vmem>>, vector<1x128xf32>
    %13 = vector.broadcast %12 : vector<1x128xf32> to vector<64x128xf32>
    %14 = arith.addf %11, %13 : vector<64x128xf32>
    %15 = tpu.iota {dimensions = array<i32: 1>} : vector<64x128xi32>
    %16 = arith.negf %14 : vector<64x128xf32>
    %17 = math.exp %16 : vector<64x128xf32>
    %cst_12 = arith.constant 1.000000e+00 : f32
    %18 = vector.broadcast %cst_12 : f32 to vector<64x128xf32>
    %19 = arith.addf %18, %17 : vector<64x128xf32>
    %20 = arith.divf %18, %19 : vector<64x128xf32>
    %c54_i32 = arith.constant 54 : i32
    %21 = vector.broadcast %c54_i32 : i32 to vector<64x128xi32>
    %22 = arith.cmpi sge, %15, %21 : vector<64x128xi32>
    %c63_i32 = arith.constant 63 : i32
    %23 = vector.broadcast %c63_i32 : i32 to vector<64x128xi32>
    %24 = arith.cmpi slt, %15, %23 : vector<64x128xi32>
    %25 = arith.andi %22, %24 : vector<64x128xi1>
    %26 = arith.select %25, %20, %14 : vector<64x128xi1>, vector<64x128xf32>
    %c0_13 = arith.constant 0 : index
    %c0_14 = arith.constant 0 : index
    %c0_15 = arith.constant 0 : index
    %27 = vector.load %arg7[%c0_13, %c0_14, %c0_15] : memref<1x64x128xf32, #tpu.memory_space<vmem>>, vector<1x64x128xf32>
    %28 = vector.shape_cast %27 : vector<1x64x128xf32> to vector<64x128xf32>
    %29 = vector.shape_cast %26 : vector<64x128xf32> to vector<1x64x128xf32>
    tpu.vector_store %arg7[%c0_13, %c0_14, %c0_15], %29 {strides = array<i32>} : memref<1x64x128xf32, #tpu.memory_space<vmem>>, vector<1x64x128xf32>,
    return
  }
  func.func @transform_0(%arg0: i32, %arg1: i32) -> (i32, i32, i32) {
    %c0_i32 = arith.constant 0 : i32
    %c0_i32_0 = arith.constant 0 : i32
    return %arg0, %arg1, %c0_i32 : i32, i32, i32
  }
  func.func @transform_1(%arg0: i32, %arg1: i32) -> (i32, i32) {
    %c0_i32 = arith.constant 0 : i32
    %c0_i32_0 = arith.constant 0 : i32
    %c0_i32_1 = arith.constant 0 : i32
    return %c0_i32, %c0_i32_0 : i32, i32
  }
  func.func @transform_2(%arg0: i32, %arg1: i32) -> (i32, i32) {
    %c0_i32 = arith.constant 0 : i32
    %c0_i32_0 = arith.constant 0 : i32
    %c0_i32_1 = arith.constant 0 : i32
    return %c0_i32, %c0_i32_0 : i32, i32
  }
  func.func @transform_3(%arg0: i32, %arg1: i32) -> (i32, i32) {
    %c0_i32 = arith.constant 0 : i32
    %c0_i32_0 = arith.constant 0 : i32
    %c0_i32_1 = arith.constant 0 : i32
    return %c0_i32, %c0_i32_0 : i32, i32
  }
  func.func @transform_4(%arg0: i32, %arg1: i32) -> (i32, i32) {
    %c0_i32 = arith.constant 0 : i32
    %c0_i32_0 = arith.constant 0 : i32
    %c0_i32_1 = arith.constant 0 : i32
    return %c0_i32, %c0_i32_0 : i32, i32
  }
  func.func @transform_5(%arg0: i32, %arg1: i32) -> (i32, i32, i32) {
    %c0_i32 = arith.constant 0 : i32
    %c0_i32_0 = arith.constant 0 : i32
    return %arg0, %arg1, %c0_i32 : i32, i32, i32
  }
}

</mosaic_0001>

<llo_original>
// kernel: tpu_custom_call.1
$region0: #{tpu_custom_call.1}
  #allocation0 [shape = 'u32[]', space=smem, size = 0x4, offset = 0x4, fixed_abs, tag = 'smem constant byte address 0x4 - core index']
  #allocation1 [shape = 'u32[144,128]{1,0:T(1,128)}', space=vmem, size = 0x12000, scoped, tag = 'internal scratch']
  %s0 = inlined_call_operand.vmem [shape: bf16[2,64,256], index: 0, kind: input, shape index: {}]
  %s1 = inlined_call_operand.vmem [shape: bf16[256,32], index: 1, kind: input, shape index: {}]
  %s2 = inlined_call_operand.vmem [shape: f32[1,32], index: 2, kind: input, shape index: {}]
  %s3 = inlined_call_operand.vmem [shape: bf16[32,128], index: 3, kind: input, shape index: {}]
  %s4 = inlined_call_operand.vmem [shape: f32[1,128], index: 4, kind: input, shape index: {}]
  %s5 = inlined_call_operand.hbm [shape: f32[2,64,128], index: 5, kind: output, shape index: {}]
  %s6 = sld [smem:[#allocation0]]
  $region53: #{tpu_custom_call.1} parent=0
    _
  %s8 = ssub.s32 1, %s6
  %s9 = scalar_select 0, %s8, %s6
  $region1: #{tpu_custom_call.1} parent=0
    #allocation2 [shape = 'u8[65536]{0}', space=vmem, size = 0x10000, scoped, tag = 'output window, operand 0']
    #allocation3 [shape = 's32[2]{0}', space=sflag, size = 0x8, scoped, tag = 'scoped memory for tpu_custom_call.1']
    %10 = vsyncpa [#allocation3], 0
    %s11 = scalar_lea.sflag [#allocation3], 1
    %12 = vsyncpa %s11, 0
    loop: start=0, step=1, limit=4
    $region2: #{tpu_custom_call.1} parent=1 // loop_pre_header
      _
    $region3: #{tpu_custom_call.1} parent=1 // loop_header
      %s14 = sphi 0, %s18
      %p15 = scmp.ge.s32.totalorder %s14, 4
      %s21 = sphi 0, %s33
      %s22 = sphi 0, %s29
      %s23 = sphi 0, %s21
      %s24 = sphi 0, %s22
      %s25 = sphi 0, %s23
      %s26 = sphi 0, %s24
      %s38 = sphi 0, %s40
      %s41 = sphi 0, %s38
      %s42 = sphi 0, %s41
      %s58 = sphi 0, %s42
      %s62 = sphi 0, %s62
      %s64 = sphi 0, %s62
      %s65 = sphi 0, %s64
      %s79 = sphi 0, %s65
      %s83 = sphi 0, %s83
      %s85 = sphi 0, %s83
      %s86 = sphi 0, %s85
      %s100 = sphi 0, %s86
      %s104 = sphi 0, %s104
      %s106 = sphi 0, %s104
      %s107 = sphi 0, %s106
      %s121 = sphi 0, %s107
      %s125 = sphi 0, %s125
      %s127 = sphi 0, %s125
      %s128 = sphi 0, %s127
      %s142 = sphi 0, %s128
      %s150 = sphi 0, %s152
      %s153 = sphi 0, %s150
      %s154 = sphi 0, %s153
      %s170 = sphi 0, %s154
    $region4: #{tpu_custom_call.1} parent=1 // loop_header_branch
      %17 = sbr.rel (%p15) target = $region8
    $region5: #{tpu_custom_call.1} parent=1 // loop_body
      %s19 = ssub.s32 %s14, 1
      %s20 = ssub.s32 %s14, 2
      %s27 = sadd.s32 1, %s22
      %p28 = scmp.ge.s32.totalorder %s27, 1
      %s29 = scalar_select %p28, 0, %s27
      %s30 = sadd.s32 1, %s21
      %s31 = scalar_select %p28, %s30, %s21
      %p32 = scmp.ge.s32.totalorder %s31, 2
      %s33 = scalar_select %p32, 0, %s31
      %s34 = ssub.s32 %s21, %s33
      %s35 = ssub.s32 %s22, %s29
      %s36 = sor.u32 %s34, %s35
      %p37 = scmp.eq.s32.totalorder %s36, 0
      %s39 = sadd.s32 %s38, 1
      %s40 = scalar_select %p37, %s38, %s39
      %p43 = pneg %p37
      %p44 = scmp.eq.s32.totalorder %s14, 1
      %p45 = por %p43, %p44
      %p46 = scmp.ne.s32.totalorder %s38, %s41
      %p47 = scmp.eq.s32.totalorder %s14, 0
      %p48 = por %p46, %p47
      %p49 = scmp.ne.s32.totalorder %s38, %s41
      %p50 = scmp.eq.s32.totalorder %s19, 1
      %p51 = por %p49, %p50
      %p52 = scmp.ne.s32.totalorder %s41, %s42
      %p53 = scmp.eq.s32.totalorder %s19, 0
      %p54 = por %p52, %p53
      %p55 = scmp.ne.s32.totalorder %s41, %s42
      %p56 = scmp.eq.s32.totalorder %s20, 1
      %p57 = por %p55, %p56
      %p59 = scmp.ne.s32.totalorder %s42, %s58
      %p60 = scmp.eq.s32.totalorder %s20, 0
      %p61 = por %p59, %p60
      %s63 = sadd.s32 %s62, 1
      %p66 = scmp.eq.s32.totalorder %s14, 1
      %p67 = scmp.ne.s32.totalorder %s62, %s64
      %p68 = scmp.eq.s32.totalorder %s14, 0
      %p69 = por %p67, %p68
      %p70 = scmp.ne.s32.totalorder %s62, %s64
      %p71 = scmp.eq.s32.totalorder %s19, 1
      %p72 = por %p70, %p71
      %p73 = scmp.ne.s32.totalorder %s64, %s65
      %p74 = scmp.eq.s32.totalorder %s19, 0
      %p75 = por %p73, %p74
      %p76 = scmp.ne.s32.totalorder %s64, %s65
      %p77 = scmp.eq.s32.totalorder %s20, 1
      %p78 = por %p76, %p77
      %p80 = scmp.ne.s32.totalorder %s65, %s79
      %p81 = scmp.eq.s32.totalorder %s20, 0
      %p82 = por %p80, %p81
      %s84 = sadd.s32 %s83, 1
      %p87 = scmp.eq.s32.totalorder %s14, 1
      %p88 = scmp.ne.s32.totalorder %s83, %s85
      %p89 = scmp.eq.s32.totalorder %s14, 0
      %p90 = por %p88, %p89
      %p91 = scmp.ne.s32.totalorder %s83, %s85
      %p92 = scmp.eq.s32.totalorder %s19, 1
      %p93 = por %p91, %p92
      %p94 = scmp.ne.s32.totalorder %s85, %s86
      %p95 = scmp.eq.s32.totalorder %s19, 0
      %p96 = por %p94, %p95
      %p97 = scmp.ne.s32.totalorder %s85, %s86
      %p98 = scmp.eq.s32.totalorder %s20, 1
      %p99 = por %p97, %p98
      %p101 = scmp.ne.s32.totalorder %s86, %s100
      %p102 = scmp.eq.s32.totalorder %s20, 0
      %p103 = por %p101, %p102
      %s105 = sadd.s32 %s104, 1
      %p108 = scmp.eq.s32.totalorder %s14, 1
      %p109 = scmp.ne.s32.totalorder %s104, %s106
      %p110 = scmp.eq.s32.totalorder %s14, 0
      %p111 = por %p109, %p110
      %p112 = scmp.ne.s32.totalorder %s104, %s106
      %p113 = scmp.eq.s32.totalorder %s19, 1
      %p114 = por %p112, %p113
      %p115 = scmp.ne.s32.totalorder %s106, %s107
      %p116 = scmp.eq.s32.totalorder %s19, 0
      %p117 = por %p115, %p116
      %p118 = scmp.ne.s32.totalorder %s106, %s107
      %p119 = scmp.eq.s32.totalorder %s20, 1
      %p120 = por %p118, %p119
      %p122 = scmp.ne.s32.totalorder %s107, %s121
      %p123 = scmp.eq.s32.totalorder %s20, 0
      %p124 = por %p122, %p123
      %s126 = sadd.s32 %s125, 1
      %p129 = scmp.eq.s32.totalorder %s14, 1
      %p130 = scmp.ne.s32.totalorder %s125, %s127
      %p131 = scmp.eq.s32.totalorder %s14, 0
      %p132 = por %p130, %p131
      %p133 = scmp.ne.s32.totalorder %s125, %s127
      %p134 = scmp.eq.s32.totalorder %s19, 1
      %p135 = por %p133, %p134
      %p136 = scmp.ne.s32.totalorder %s127, %s128
      %p137 = scmp.eq.s32.totalorder %s19, 0
      %p138 = por %p136, %p137
      %p139 = scmp.ne.s32.totalorder %s127, %s128
      %p140 = scmp.eq.s32.totalorder %s20, 1
      %p141 = por %p139, %p140
      %p143 = scmp.ne.s32.totalorder %s128, %s142
      %p144 = scmp.eq.s32.totalorder %s20, 0
      %p145 = por %p143, %p144
      %s146 = ssub.s32 %s21, %s33
      %s147 = ssub.s32 %s22, %s29
      %s148 = sor.u32 %s146, %s147
      %p149 = scmp.eq.s32.totalorder %s148, 0
      %s151 = sadd.s32 %s150, 1
      %s152 = scalar_select %p149, %s150, %s151
      %p155 = pneg %p149
      %p156 = scmp.eq.s32.totalorder %s14, 1
      %p157 = por %p155, %p156
      %p158 = scmp.ne.s32.totalorder %s150, %s153
      %p159 = scmp.eq.s32.totalorder %s14, 0
      %p160 = por %p158, %p159
      %p161 = scmp.ne.s32.totalorder %s150, %s153
      %p162 = scmp.eq.s32.totalorder %s19, 1
      %p163 = por %p161, %p162
      %p164 = scmp.ne.s32.totalorder %s153, %s154
      %p165 = scmp.eq.s32.totalorder %s19, 0
      %p166 = por %p164, %p165
      %p167 = scmp.ne.s32.totalorder %s153, %s154
      %p168 = scmp.eq.s32.totalorder %s20, 1
      %p169 = por %p167, %p168
      %p171 = scmp.ne.s32.totalorder %s154, %s170
      %p172 = scmp.eq.s32.totalorder %s20, 0
      %p173 = por %p171, %p172
      %p174 = scmp.le.s32.totalorder 1, %s14
      %p175 = scmp.lt.s32.totalorder %s14, 3
      %p176 = pnand %p174, %p175
      %p177 = pneg %p176
      // Predicated region
      $region9: #{tpu_custom_call.1} parent=5 // pred_check
        _
      $region10: #{tpu_custom_call.1} parent=5 // pred_check_branch
        %179 = sbr.rel (%p176) target = $region12
      $region11: #{tpu_custom_call.1} parent=5 // pred_region
        %s180 = ssub.s32 %s14, 1
        // Predicated region
        $region13: #{tpu_custom_call.1} parent=11 // pred_check
          %p181 = pneg %p75
        $region14: #{tpu_custom_call.1} parent=11 // pred_check_branch
          %183 = sbr.rel (%p181) target = $region16
        $region15: #{tpu_custom_call.1} parent=11 // pred_region
          _
        $region16: #{tpu_custom_call.1} parent=11 // pred_fallthru
          _
        // Predicated region
        $region17: #{tpu_custom_call.1} parent=11 // pred_check
          %p184 = pneg %p96
        $region18: #{tpu_custom_call.1} parent=11 // pred_check_branch
          %186 = sbr.rel (%p184) target = $region20
        $region19: #{tpu_custom_call.1} parent=11 // pred_region
          _
        $region20: #{tpu_custom_call.1} parent=11 // pred_fallthru
          _
        // Predicated region
        $region21: #{tpu_custom_call.1} parent=11 // pred_check
          %p187 = pneg %p117
        $region22: #{tpu_custom_call.1} parent=11 // pred_check_branch
          %189 = sbr.rel (%p187) target = $region24
        $region23: #{tpu_custom_call.1} parent=11 // pred_region
          _
        $region24: #{tpu_custom_call.1} parent=11 // pred_fallthru
          _
        // Predicated region
        $region25: #{tpu_custom_call.1} parent=11 // pred_check
          %p190 = pneg %p138
        $region26: #{tpu_custom_call.1} parent=11 // pred_check_branch
          %192 = sbr.rel (%p190) target = $region28
        $region27: #{tpu_custom_call.1} parent=11 // pred_region
          _
        $region28: #{tpu_custom_call.1} parent=11 // pred_fallthru
          _
      $region12: #{tpu_custom_call.1} parent=5 // pred_fallthru
        _
      %p193 = scmp.lt.s32.totalorder %s14, 2
      // Predicated region
      $region29: #{tpu_custom_call.1} parent=5 // pred_check
        %p194 = pneg %p193
      $region30: #{tpu_custom_call.1} parent=5 // pred_check_branch
        %196 = sbr.rel (%p194) target = $region32
      $region31: #{tpu_custom_call.1} parent=5 // pred_region
        // Predicated region
        $region33: #{tpu_custom_call.1} parent=31 // pred_check
          %p197 = pneg %p48
        $region34: #{tpu_custom_call.1} parent=31 // pred_check_branch
          %199 = sbr.rel (%p197) target = $region36
        $region35: #{tpu_custom_call.1} parent=31 // pred_region
          %s200 = smul.u32 8, %s22
          %p201 = scmp.lt.s32.totalorder %s21, 1
          %s202 = scalar_select %p201, %s21, 1
          %p203 = scmp.lt.s32.totalorder %s200, 7
          %s204 = scalar_select %p203, %s200, 7
          %s205 = smul.addr %s204, 2
          %s206 = smul.addr %s202, 16
          %s207 = sadd.s32 %s205, %s206
          %s208 = smul.addr %s207, 4
          %s209 = scalar_lea.vmem %s0, %s208
          %s210 = smul.u32 8, %s22
        $region36: #{tpu_custom_call.1} parent=31 // pred_fallthru
          _
      $region32: #{tpu_custom_call.1} parent=5 // pred_fallthru
        _
      %p211 = scmp.le.s32.totalorder 1, %s14
      %p212 = scmp.lt.s32.totalorder %s14, 3
      %p213 = pnand %p211, %p212
      %p214 = pneg %p213
      // Predicated region
      $region37: #{tpu_custom_call.1} parent=5 // pred_check
        _
      $region38: #{tpu_custom_call.1} parent=5 // pred_check_branch
        %216 = sbr.rel (%p213) target = $region40
      $region39: #{tpu_custom_call.1} parent=5 // pred_region
        %s217 = ssub.s32 %s14, 1
        %s218 = smul.u32 8, %s24
        %p219 = scmp.lt.s32.totalorder %s23, 1
        %s220 = scalar_select %p219, %s23, 1
        %p221 = scmp.lt.s32.totalorder %s218, 7
        %s222 = scalar_select %p221, %s218, 7
        %s223 = smul.addr %s222, 2
        %s224 = smul.addr %s220, 16
        %s225 = sadd.s32 %s223, %s224
        %s226 = smul.addr %s225, 4
        %s227 = scalar_lea.vmem %s0, %s226
        %p228 = pneg %p54
        %p229 = pneg %p51
        %p230 = pneg %p75
        %p231 = pneg %p72
        %p232 = pneg %p96
        %p233 = pneg %p93
        %p234 = pneg %p117
        %p235 = pneg %p114
        %p236 = pneg %p138
        %p237 = pneg %p135
        %p238 = pneg %p166
        %p239 = pneg %p163
        %s240 = sand.u32 %s153, 1
        %s241 = scalar_lea.sflag [#allocation3], %s240
        %s242 = sand.u32 %s153, 1
        %s243 = smul.addr %s242, 64
        %s244 = scalar_lea.vmem [#allocation2], %s243
        %s245 = smul.u32 8, %s24
        %p246 = scmp.lt.s32.totalorder %s23, 1
        %s247 = scalar_select %p246, %s23, 1
        %p248 = scmp.lt.s32.totalorder %s245, 7
        %s249 = scalar_select %p248, %s245, 7
        %s250 = smul.addr %s249, 2
        %s251 = smul.addr %s247, 16
        %s252 = sadd.s32 %s250, %s251
        %s253 = smul.addr %s252, 4
        %s254 = scalar_lea.vmem %s0, %s253
        %s255 = smul.u32 8, %s24
        %s256 = smul.u32 8, %s24
        %v258 = vld [vmem:[%s254] sm:$0xff]
        %v259 = vld [vmem:[%s254 + $0x8] sm:$0xff]
        %v260 = vld [vmem:[%s254 + $0x10] sm:$0xff]
        %v261 = vld [vmem:[%s254 + $0x18] sm:$0xff]
        %v262 = vld [vmem:[%s254 + $0x20] sm:$0xff]
        %v263 = vld [vmem:[%s254 + $0x28] sm:$0xff]
        %v264 = vld [vmem:[%s254 + $0x30] sm:$0xff]
        %v265 = vld [vmem:[%s254 + $0x38] sm:$0xff]
        %v266 = vld [vmem:[%s1] sm:$0xf]
        %v267 = vld [vmem:[%s1 + $0x4] sm:$0xf]
        %v268 = vld [vmem:[%s1 + $0x8] sm:$0xf]
        %v269 = vld [vmem:[%s1 + $0xc] sm:$0xf]
        %v270 = vld [vmem:[%s1 + $0x10] sm:$0xf]
        %v271 = vld [vmem:[%s1 + $0x14] sm:$0xf]
        %v272 = vld [vmem:[%s1 + $0x18] sm:$0xf]
        %v273 = vld [vmem:[%s1 + $0x1c] sm:$0xf]
        %v274 = vld [vmem:[%s1 + $0x20] sm:$0xf]
        %v275 = vld [vmem:[%s1 + $0x24] sm:$0xf]
        %v276 = vld [vmem:[%s1 + $0x28] sm:$0xf]
        %v277 = vld [vmem:[%s1 + $0x2c] sm:$0xf]
        %v278 = vld [vmem:[%s1 + $0x30] sm:$0xf]
        %v279 = vld [vmem:[%s1 + $0x34] sm:$0xf]
        %v280 = vld [vmem:[%s1 + $0x38] sm:$0xf]
        %v281 = vld [vmem:[%s1 + $0x3c] sm:$0xf]
        %v282 = vld [vmem:[%s1 + $0x40] sm:$0xf]
        %v283 = vld [vmem:[%s1 + $0x44] sm:$0xf]
        %v284 = vld [vmem:[%s1 + $0x48] sm:$0xf]
        %v285 = vld [vmem:[%s1 + $0x4c] sm:$0xf]
        %v286 = vld [vmem:[%s1 + $0x50] sm:$0xf]
        %v287 = vld [vmem:[%s1 + $0x54] sm:$0xf]
        %v288 = vld [vmem:[%s1 + $0x58] sm:$0xf]
        %v289 = vld [vmem:[%s1 + $0x5c] sm:$0xf]
        %v290 = vld [vmem:[%s1 + $0x60] sm:$0xf]
        %v291 = vld [vmem:[%s1 + $0x64] sm:$0xf]
        %v292 = vld [vmem:[%s1 + $0x68] sm:$0xf]
        %v293 = vld [vmem:[%s1 + $0x6c] sm:$0xf]
        %v294 = vld [vmem:[%s1 + $0x70] sm:$0xf]
        %v295 = vld [vmem:[%s1 + $0x74] sm:$0xf]
        %v296 = vld [vmem:[%s1 + $0x78] sm:$0xf]
        %v297 = vld [vmem:[%s1 + $0x7c] sm:$0xf]
        %v298 = vld [vmem:[%s2] sm:$0x1]
        %v300 = vlaneseq
        %v301 = vshrl.u32 %v300, 7
        %v302 = vsub.s32 0, %v301
        %v303 = vrot.slane %v298, %v302
        %v313 = vunpack.c.l.b16 %v258
        %v314 = vunpack.c.h.b16 %v258
        %v315 = vunpack.c.l.b16 %v259
        %v316 = vunpack.c.h.b16 %v259
        %v317 = vunpack.c.l.b16 %v260
        %v318 = vunpack.c.h.b16 %v260
        %v319 = vunpack.c.l.b16 %v261
        %v320 = vunpack.c.h.b16 %v261
        %v321 = vunpack.c.l.b16 %v262
        %v322 = vunpack.c.h.b16 %v262
        %v323 = vunpack.c.l.b16 %v263
        %v324 = vunpack.c.h.b16 %v263
        %v325 = vunpack.c.l.b16 %v264
        %v326 = vunpack.c.h.b16 %v264
        %v327 = vunpack.c.l.b16 %v265
        %v328 = vunpack.c.h.b16 %v265
        %v329 = vpack.c.b16 %v315, %v313
        %v330 = vpack.c.b16 %v316, %v314
        %v331 = vpack.c.b16 %v319, %v317
        %v332 = vpack.c.b16 %v320, %v318
        %v333 = vpack.c.b16 %v323, %v321
        %v334 = vpack.c.b16 %v324, %v322
        %v335 = vpack.c.b16 %v327, %v325
        %v336 = vpack.c.b16 %v328, %v326
        %v377 = vunpack.c.l.b16 %v266
        %v378 = vunpack.c.l.b16 %v267
        %v379 = vunpack.c.l.b16 %v268
        %v380 = vunpack.c.l.b16 %v269
        %v381 = vunpack.c.l.b16 %v270
        %v382 = vunpack.c.l.b16 %v271
        %v383 = vunpack.c.l.b16 %v272
        %v384 = vunpack.c.l.b16 %v273
        %v385 = vunpack.c.l.b16 %v274
        %v386 = vunpack.c.l.b16 %v275
        %v387 = vunpack.c.l.b16 %v276
        %v388 = vunpack.c.l.b16 %v277
        %v389 = vunpack.c.l.b16 %v278
        %v390 = vunpack.c.l.b16 %v279
        %v391 = vunpack.c.l.b16 %v280
        %v392 = vunpack.c.l.b16 %v281
        %v393 = vunpack.c.l.b16 %v282
        %v394 = vunpack.c.l.b16 %v283
        %v395 = vunpack.c.l.b16 %v284
        %v396 = vunpack.c.l.b16 %v285
        %v397 = vunpack.c.l.b16 %v286
        %v398 = vunpack.c.l.b16 %v287
        %v399 = vunpack.c.l.b16 %v288
        %v400 = vunpack.c.l.b16 %v289
        %v401 = vunpack.c.l.b16 %v290
        %v402 = vunpack.c.l.b16 %v291
        %v403 = vunpack.c.l.b16 %v292
        %v404 = vunpack.c.l.b16 %v293
        %v405 = vunpack.c.l.b16 %v294
        %v406 = vunpack.c.l.b16 %v295
        %v407 = vunpack.c.l.b16 %v296
        %v408 = vunpack.c.l.b16 %v297
        %v409 = vpack.c.b16 %v378, %v377
        %v410 = vpack.c.b16 %v380, %v379
        %v411 = vpack.c.b16 %v382, %v381
        %v412 = vpack.c.b16 %v384, %v383
        %v413 = vpack.c.b16 %v386, %v385
        %v414 = vpack.c.b16 %v388, %v387
        %v415 = vpack.c.b16 %v390, %v389
        %v416 = vpack.c.b16 %v392, %v391
        %v417 = vpack.c.b16 %v394, %v393
        %v418 = vpack.c.b16 %v396, %v395
        %v419 = vpack.c.b16 %v398, %v397
        %v420 = vpack.c.b16 %v400, %v399
        %v421 = vpack.c.b16 %v402, %v401
        %v422 = vpack.c.b16 %v404, %v403
        %v423 = vpack.c.b16 %v406, %v405
        %v424 = vpack.c.b16 %v408, %v407
        %441 = vmatprep.subr.bf16.mxu0 0
        %442 = vmatpush1.bf16.msra.mxu0 %v409
        %443 = vmatprep.subr.bf16.mxu0 0
        %444 = vmatpush1.bf16.msra.mxu0 %v410
        %445 = vmatprep.subr.bf16.mxu0 0
        %446 = vmatpush1.bf16.msra.mxu0 %v411
        %447 = vmatprep.subr.bf16.mxu0 0
        %448 = vmatpush1.bf16.msra.mxu0 %v412
        %449 = vmatprep.subr.bf16.mxu0 0
        %450 = vmatpush1.bf16.msra.mxu0 %v413
        %451 = vmatprep.subr.bf16.mxu0 0
        %452 = vmatpush1.bf16.msra.mxu0 %v414
        %453 = vmatprep.subr.bf16.mxu0 0
        %454 = vmatpush1.bf16.msra.mxu0 %v415
        %455 = vmatprep.subr.bf16.mxu0 0
        %456 = vmatpush1.bf16.msra.mxu0 %v416
        %457 = vmatprep.subr.bf16.mxu0 0
        %458 = vmatpush1.bf16.msra.mxu0 %v417
        %459 = vmatprep.subr.bf16.mxu0 0
        %460 = vmatpush1.bf16.msra.mxu0 %v418
        %461 = vmatprep.subr.bf16.mxu0 0
        %462 = vmatpush1.bf16.msra.mxu0 %v419
        %463 = vmatprep.subr.bf16.mxu0 0
        %464 = vmatpush1.bf16.msra.mxu0 %v420
        %465 = vmatprep.subr.bf16.mxu0 0
        %466 = vmatpush1.bf16.msra.mxu0 %v421
        %467 = vmatprep.subr.bf16.mxu0 0
        %468 = vmatpush1.bf16.msra.mxu0 %v422
        %469 = vmatprep.subr.bf16.mxu0 0
        %470 = vmatpush1.bf16.msra.mxu0 %v423
        %471 = vmatprep.subr.bf16.mxu0 0
        %472 = vmatpush1.bf16.msra.mxu0 %v424
        %473 = vmatprep.mubr.bf16.mxu0 %v330
        %474 = vmatmul.mubr.bf16.gmra.mrb[0].mxu0 %v329
        %v475 = vpop.f32.mrb[0].mxu0
        %v476 = vadd.f32 %v303, %v475
        %v477 = vpop.f32.mrb[0].mxu0
        %v478 = vpop.f32.mrb[0].mxu0
        %v479 = vadd.f32 %v303, %v478
        %v480 = vpop.f32.mrb[0].mxu0
        %481 = vmatprep.mubr.bf16.mxu0 %v332
        %482 = vmatmul.mubr.bf16.gmra.mrb[0].mxu0 %v331
        %v483 = vpop.f32.mrb[0].mxu0
        %v484 = vadd.f32 %v303, %v483
        %v485 = vpop.f32.mrb[0].mxu0
        %v486 = vpop.f32.mrb[0].mxu0
        %v487 = vadd.f32 %v303, %v486
        %v488 = vpop.f32.mrb[0].mxu0
        %489 = vmatprep.mubr.bf16.mxu0 %v334
        %490 = vmatmul.mubr.bf16.gmra.mrb[0].mxu0 %v333
        %v491 = vpop.f32.mrb[0].mxu0
        %v492 = vadd.f32 %v303, %v491
        %v493 = vpop.f32.mrb[0].mxu0
        %v494 = vpop.f32.mrb[0].mxu0
        %v495 = vadd.f32 %v303, %v494
        %v496 = vpop.f32.mrb[0].mxu0
        %497 = vmatprep.mubr.bf16.mxu0 %v336
        %498 = vmatmul.mubr.bf16.gmra.mrb[0].mxu0 %v335
        %v499 = vpop.f32.mrb[0].mxu0
        %v500 = vadd.f32 %v303, %v499
        %v501 = vpop.f32.mrb[0].mxu0
        %v502 = vpop.f32.mrb[0].mxu0
        %v503 = vadd.f32 %v303, %v502
        %v504 = vpop.f32.mrb[0].mxu0
        %505 = vdwg.mxu0
        %v506 = vmax.f32 %v476, 0.0
        %v507 = vmax.f32 %v479, 0.0
        %v508 = vmax.f32 %v484, 0.0
        %v509 = vmax.f32 %v487, 0.0
        %v510 = vmax.f32 %v492, 0.0
        %v511 = vmax.f32 %v495, 0.0
        %v512 = vmax.f32 %v500, 0.0
        %v513 = vmax.f32 %v503, 0.0
        %v514 = vpack.c.bf16 %v507, %v506
        %v515 = vpack.c.bf16 %v509, %v508
        %v516 = vpack.c.bf16 %v511, %v510
        %v517 = vpack.c.bf16 %v513, %v512
        %v518 = vld [vmem:[%s3] sm:$0xf]
        %v519 = vld [vmem:[%s3 + $0x4] sm:$0xf]
        %v520 = vld [vmem:[%s3 + $0x8] sm:$0xf]
        %v521 = vld [vmem:[%s3 + $0xc] sm:$0xf]
        %v522 = vld [vmem:[%s4] sm:$0x1]
        %v524 = vlaneseq
        %v525 = vshrl.u32 %v524, 7
        %v526 = vsub.s32 0, %v525
        %v527 = vrot.slane %v522, %v526
        %v533 = vunpack.c.l.b16 %v518
        %v534 = vunpack.c.l.b16 %v519
        %v535 = vunpack.c.l.b16 %v520
        %v536 = vunpack.c.l.b16 %v521
        %v537 = vpack.c.b16 %v534, %v533
        %v538 = vpack.c.b16 %v536, %v535
        %vm541 = vcmask 261120
        %v543 = vsel %vm541, %v514, 0
        %v546 = vsel %vm541, %v515, 0
        %v549 = vsel %vm541, %v516, 0
        %v552 = vsel %vm541, %v517, 0
        %554 = vmatprep.subr.bf16.mxu0 0
        %555 = vmatpush1.bf16.msra.mxu0 %v537
        %556 = vmatprep.subr.bf16.mxu0 0
        %557 = vmatpush1.bf16.msra.mxu0 %v538
        %558 = vmatprep.subr.bf16.mxu0 0
        %559 = vmatpush1.bf16.msra.mxu0 0
        %560 = vmatprep.subr.bf16.mxu0 0
        %561 = vmatpush1.bf16.msra.mxu0 0
        %562 = vmatprep.subr.bf16.mxu0 0
        %563 = vmatpush1.bf16.msra.mxu0 0
        %564 = vmatprep.subr.bf16.mxu0 0
        %565 = vmatpush1.bf16.msra.mxu0 0
        %566 = vmatprep.subr.bf16.mxu0 0
        %567 = vmatpush1.bf16.msra.mxu0 0
        %568 = vmatprep.subr.bf16.mxu0 0
        %569 = vmatpush1.bf16.msra.mxu0 0
        %570 = vmatprep.subr.bf16.mxu0 0
        %571 = vmatpush1.bf16.msra.mxu0 0
        %572 = vmatprep.subr.bf16.mxu0 0
        %573 = vmatpush1.bf16.msra.mxu0 0
        %574 = vmatprep.subr.bf16.mxu0 0
        %575 = vmatpush1.bf16.msra.mxu0 0
        %576 = vmatprep.subr.bf16.mxu0 0
        %577 = vmatpush1.bf16.msra.mxu0 0
        %578 = vmatprep.subr.bf16.mxu0 0
        %579 = vmatpush1.bf16.msra.mxu0 0
        %580 = vmatprep.subr.bf16.mxu0 0
        %581 = vmatpush1.bf16.msra.mxu0 0
        %582 = vmatprep.subr.bf16.mxu0 0
        %583 = vmatpush1.bf16.msra.mxu0 0
        %584 = vmatprep.subr.bf16.mxu0 0
        %585 = vmatpush1.bf16.msra.mxu0 0
        %586 = vmatprep.mubr.bf16.mxu0 0
        %587 = vmatmul.mubr.bf16.gmra.mrb[0].mxu0 %v543
        %v588 = vpop.f32.mrb[0].mxu0
        %v589 = vadd.f32 %v527, %v588
        %v590 = vpop.f32.mrb[0].mxu0
        %v591 = vpop.f32.mrb[0].mxu0
        %v592 = vadd.f32 %v527, %v591
        %v593 = vpop.f32.mrb[0].mxu0
        %594 = vmatprep.mubr.bf16.mxu0 0
        %595 = vmatmul.mubr.bf16.gmra.mrb[0].mxu0 %v546
        %v596 = vpop.f32.mrb[0].mxu0
        %v597 = vadd.f32 %v527, %v596
        %v598 = vpop.f32.mrb[0].mxu0
        %v599 = vpop.f32.mrb[0].mxu0
        %v600 = vadd.f32 %v527, %v599
        %v601 = vpop.f32.mrb[0].mxu0
        %602 = vmatprep.mubr.bf16.mxu0 0
        %603 = vmatmul.mubr.bf16.gmra.mrb[0].mxu0 %v549
        %v604 = vpop.f32.mrb[0].mxu0
        %v605 = vadd.f32 %v527, %v604
        %v606 = vpop.f32.mrb[0].mxu0
        %v607 = vpop.f32.mrb[0].mxu0
        %v608 = vadd.f32 %v527, %v607
        %v609 = vpop.f32.mrb[0].mxu0
        %610 = vmatprep.mubr.bf16.mxu0 0
        %611 = vmatmul.mubr.bf16.gmra.mrb[0].mxu0 %v552
        %v612 = vpop.f32.mrb[0].mxu0
        %v613 = vadd.f32 %v527, %v612
        %v614 = vpop.f32.mrb[0].mxu0
        %v615 = vpop.f32.mrb[0].mxu0
        %v616 = vadd.f32 %v527, %v615
        %v617 = vpop.f32.mrb[0].mxu0
        %618 = vdwg.mxu0
        %v619 = vlaneseq
        %v620 = vand.u32 %v619, 127
        %v621 = vxor.u32 %v589, 2147483648
        %v622 = vxor.u32 %v592, 2147483648
        %v623 = vxor.u32 %v597, 2147483648
        %v624 = vxor.u32 %v600, 2147483648
        %v625 = vxor.u32 %v605, 2147483648
        %v626 = vxor.u32 %v608, 2147483648
        %v627 = vxor.u32 %v613, 2147483648
        %v628 = vxor.u32 %v616, 2147483648
        %v629 = vmul.f32 %v621, 1.442695
        %v630 = vpow.pop %v629
        %v631 = vmul.f32 %v622, 1.442695
        %v632 = vpow.pop %v631
        %v633 = vmul.f32 %v623, 1.442695
        %v634 = vpow.pop %v633
        %v635 = vmul.f32 %v624, 1.442695
        %v636 = vpow.pop %v635
        %v637 = vmul.f32 %v625, 1.442695
        %v638 = vpow.pop %v637
        %v639 = vmul.f32 %v626, 1.442695
        %v640 = vpow.pop %v639
        %v641 = vmul.f32 %v627, 1.442695
        %v642 = vpow.pop %v641
        %v643 = vmul.f32 %v628, 1.442695
        %v644 = vpow.pop %v643
        %v645 = vadd.f32 %v630, 1.0
        %v646 = vadd.f32 %v632, 1.0
        %v647 = vadd.f32 %v634, 1.0
        %v648 = vadd.f32 %v636, 1.0
        %v649 = vadd.f32 %v638, 1.0
        %v650 = vadd.f32 %v640, 1.0
        %v651 = vadd.f32 %v642, 1.0
        %v652 = vadd.f32 %v644, 1.0
        %v653 = vrcp.pop %v645
        %v654 = vmul.f32 1.0, %v653
        %v655 = vrcp.pop %v646
        %v656 = vmul.f32 1.0, %v655
        %v657 = vrcp.pop %v647
        %v658 = vmul.f32 1.0, %v657
        %v659 = vrcp.pop %v648
        %v660 = vmul.f32 1.0, %v659
        %v661 = vrcp.pop %v649
        %v662 = vmul.f32 1.0, %v661
        %v663 = vrcp.pop %v650
        %v664 = vmul.f32 1.0, %v663
        %v665 = vrcp.pop %v651
        %v666 = vmul.f32 1.0, %v665
        %v667 = vrcp.pop %v652
        %v668 = vmul.f32 1.0, %v667
        %vm669 = vcmp.ge.s32.totalorder %v620, 54
        %vm670 = vcmp.lt.s32.totalorder %v620, 63
        %vm671 = vmand %vm669, %vm670
        %v672 = vsel %vm671, %v654, %v589
        %v673 = vsel %vm671, %v656, %v592
        %v674 = vsel %vm671, %v658, %v597
        %v675 = vsel %vm671, %v660, %v600
        %v676 = vsel %vm671, %v662, %v605
        %v677 = vsel %vm671, %v664, %v608
        %v678 = vsel %vm671, %v666, %v613
        %v679 = vsel %vm671, %v668, %v616
        %680 = vst [vmem:[%s244] sm:$0xff] %v672
        %681 = vst [vmem:[%s244 + $0x8] sm:$0xff] %v673
        %682 = vst [vmem:[%s244 + $0x10] sm:$0xff] %v674
        %683 = vst [vmem:[%s244 + $0x18] sm:$0xff] %v675
        %684 = vst [vmem:[%s244 + $0x20] sm:$0xff] %v676
        %685 = vst [vmem:[%s244 + $0x28] sm:$0xff] %v677
        %686 = vst [vmem:[%s244 + $0x30] sm:$0xff] %v678
        %687 = vst [vmem:[%s244 + $0x38] sm:$0xff] %v679
        %s688 = sand.u32 %s153, 1
        %s689 = scalar_lea.sflag [#allocation3], %s688
        %s690 = sand.u32 %s153, 1
        %s691 = smul.addr %s690, 64
        %s692 = scalar_lea.vmem [#allocation2], %s691
        // Predicated region
        $region41: #{tpu_custom_call.1} parent=39 // pred_check
          %p693 = pneg %p163
        $region42: #{tpu_custom_call.1} parent=39 // pred_check_branch
          %695 = sbr.rel (%p693) target = $region44
        $region43: #{tpu_custom_call.1} parent=39 // pred_region
          %s696 = smul.u32 8, %s24
          %s698 = ssub.s32 1024, 1024
          %699 = vsyncadd %s689, %s698
          %s700 = smul.addr %s23, 8
          %s701 = sadd.s32 %s696, %s700
          %s702 = smul.addr %s701, 128
          %s703 = scalar_lea.hbm %s5, %s702
          %s704 = sshll.u32 %s692, 4
          %s705 = int_to_ptr.vmem [resolvable:$true] %s704
          %710 = dma.vmem_to_hbm [thread:$0]  %s705, 1024, %s703, %s689, 128, 128, 8
        $region44: #{tpu_custom_call.1} parent=39 // pred_fallthru
          _
      $region40: #{tpu_custom_call.1} parent=5 // pred_fallthru
        _
      %p711 = scmp.le.s32.totalorder 2, %s14
      // Predicated region
      $region45: #{tpu_custom_call.1} parent=5 // pred_check
        %p712 = pneg %p711
      $region46: #{tpu_custom_call.1} parent=5 // pred_check_branch
        %714 = sbr.rel (%p712) target = $region48
      $region47: #{tpu_custom_call.1} parent=5 // pred_region
        %s715 = ssub.s32 %s14, 2
        // Predicated region
        $region49: #{tpu_custom_call.1} parent=47 // pred_check
          %p716 = pneg %p169
        $region50: #{tpu_custom_call.1} parent=47 // pred_check_branch
          %718 = sbr.rel (%p716) target = $region52
        $region51: #{tpu_custom_call.1} parent=47 // pred_region
          %s719 = sand.u32 %s154, 1
          %s720 = scalar_lea.sflag [#allocation3], %s719
          %s721 = sand.u32 %s154, 1
          %s722 = smul.addr %s721, 64
          %s723 = scalar_lea.vmem [#allocation2], %s722
          %724 = dma.done %s720, 1024
        $region52: #{tpu_custom_call.1} parent=47 // pred_fallthru
          _
      $region48: #{tpu_custom_call.1} parent=5 // pred_fallthru
        _
    $region6: #{tpu_custom_call.1} parent=1 // loop_footer
      %s18 = sadd.s32 1, %s14
    $region7: #{tpu_custom_call.1} parent=1 // loop_footer_branch
      %13 = sbr.rel target = $region3
    $region8: #{tpu_custom_call.1} parent=1 // loop_exit
      _
    %725 = vsyncpa [#allocation3], 1
    %s726 = scalar_lea.sflag [#allocation3], 1
    %727 = vsyncpa %s726, 1

</llo_original>
